<compile_context>
chip_gen: v7x
topology: tpu7x:2x2x1
jax: 0.10.0
libtpu: 0.0.40
codegen_flags: <defaults>
</compile_context>

<pallas_src>
import jax
import jax.numpy as jnp
from jax.experimental import pallas as pl
from jax.experimental.pallas import tpu as pltpu

IN_DIM = 20
H1 = 100
H2 = 50
OUT_DIM = 5

MAX_TILE_T = 2048      # lane-axis tile cap; multiple of 256 (v6e/v7x MXU friendly)
MAX_BB = 8             # max batches folded into one grid step
MAX_BLOCK_COLS = 8192  # cap bb * tile_t so unrolled per-step temporaries stay small


def _round_up(n, m):
    return ((n + m - 1) // m) * m


def _mlp_kernel(x_ref, w1_ref, b1_ref, w2_ref, b2_ref, w3_ref, b3_ref, o_ref):
    # x_ref: (BB, 20, TILE_T) -> h1 (100, TILE_T) -> h2 (50, TILE_T)
    # o_ref: (BB, 5, TILE_T).  TILE_T is the lane axis everywhere.
    w1 = w1_ref[...]
    b1 = b1_ref[...]
    w2 = w2_ref[...]
    b2 = b2_ref[...]
    w3 = w3_ref[...]
    b3 = b3_ref[...]
    # Short static batch loop (fully unrolled at trace time): keeps every
    # matmul a plain 2-D MXU op (no batched-dot -> no in-kernel transposes).
    for bb in range(x_ref.shape[0]):
        x = x_ref[bb]                                                  # (20, T)
        h1 = jnp.tanh(jnp.dot(w1, x, preferred_element_type=jnp.float32) + b1)
        # Dropout(0.2) is identity at inference time.
        h2 = jnp.tanh(jnp.dot(w2, h1, preferred_element_type=jnp.float32) + b2)
        o_ref[bb] = (
            jnp.dot(w3, h2, preferred_element_type=jnp.float32) + b3
        ).astype(o_ref.dtype)


@jax.jit
def network_model_forward(x, lengths, params):
    """x: (B, 20, T) float32; lengths: (B,) int32 (unused). Returns (B, 5, T)."""
    del lengths  # not used by the PyTorch forward either
    w1, b1, w2, b2, w3, b3 = params
    B, C, T = x.shape
    assert C == IN_DIM

    # --- T-tile selection: fewest 128-aligned tiles <= MAX_TILE_T, as even
    # as possible so the ragged last tile wastes < 128 lanes.
    t128 = _round_up(T, 128)
    n_t = pl.cdiv(t128, MAX_TILE_T)
    # v7x: guarantee >= 2 grid points so both TensorCores get work.
    if B == 1 and n_t == 1 and t128 >= 256:
        n_t = 2
    tile_t = _round_up(pl.cdiv(T, n_t), 128)
    n_t = pl.cdiv(T, tile_t)

    # --- Batch-block selection: fold batches when each is a single T-tile
    # (amortizes per-step overhead), keeping >= 2 grid points for v7x.
    if n_t == 1:
        bb = max(1, min(MAX_BB, MAX_BLOCK_COLS // tile_t, (B + 1) // 2))
    else:
        bb = 1
    n_b = pl.cdiv(B, bb)

    # Pre-transpose weights once: feature-major matmul is W^T @ x_block.
    w1t = jnp.transpose(w1)  # (H1, IN_DIM)
    w2t = jnp.transpose(w2)  # (H2, H1)
    w3t = jnp.transpose(w3)  # (OUT_DIM, H2)
    b1c = b1.reshape(H1, 1)
    b2c = b2.reshape(H2, 1)
    b3c = b3.reshape(OUT_DIM, 1)

    work_cols = n_b * bb * n_t * tile_t
    cost = pl.CostEstimate(
        flops=2 * work_cols * (IN_DIM * H1 + H1 * H2 + H2 * OUT_DIM),
        transcendentals=work_cols * (H1 + H2),
        bytes_accessed=4
        * (
            B * T * (IN_DIM + OUT_DIM)
            + IN_DIM * H1 + H1
            + H1 * H2 + H2
            + H2 * OUT_DIM + OUT_DIM
        ),
    )

    out = pl.pallas_call(
        _mlp_kernel,
        out_shape=jax.ShapeDtypeStruct((B, OUT_DIM, T), jnp.float32),
        grid_spec=pltpu.PrefetchScalarGridSpec(
            num_scalar_prefetch=0,
            grid=(n_b, n_t),
            in_specs=[
                # x: (batch-block, full features, time-tile); ragged edges clipped by Pallas.
                pl.BlockSpec((bb, IN_DIM, tile_t), lambda b, t: (b, 0, t)),
                # Weights/biases: whole-array VMEM residents (constant index_map).
                pl.BlockSpec((H1, IN_DIM), lambda b, t: (0, 0)),
                pl.BlockSpec((H1, 1), lambda b, t: (0, 0)),
                pl.BlockSpec((H2, H1), lambda b, t: (0, 0)),
                pl.BlockSpec((H2, 1), lambda b, t: (0, 0)),
                pl.BlockSpec((OUT_DIM, H2), lambda b, t: (0, 0)),
                pl.BlockSpec((OUT_DIM, 1), lambda b, t: (0, 0)),
            ],
            out_specs=pl.BlockSpec((bb, OUT_DIM, tile_t), lambda b, t: (b, 0, t)),
        ),
        compiler_params=pltpu.CompilerParams(
            dimension_semantics=("parallel", "parallel")
        ),
        cost_estimate=cost,
    )(x, w1t, b1c, w2t, b2c, w3t, b3c)

    return out


def init_params(key):
    """Deterministic init matching nn.Linear shapes (uniform +-1/sqrt(fan_in))."""
    ks = jax.random.split(key, 6)

    def lin(kw, kb, fan_in, fan_out):
        bound = 1.0 / jnp.sqrt(fan_in)
        w = jax.random.uniform(kw, (fan_in, fan_out), jnp.float32, -bound, bound)
        b = jax.random.uniform(kb, (fan_out,), jnp.float32, -bound, bound)
        return w, b

    w1, b1 = lin(ks[0], ks[1], IN_DIM, H1)
    w2, b2 = lin(ks[2], ks[3], H1, H2)
    w3, b3 = lin(ks[4], ks[5], H2, OUT_DIM)
    return (w1, b1, w2, b2, w3, b3)


def _reference(x, params):
    """Pure-JAX reference of the same forward (eval mode)."""
    w1, b1, w2, b2, w3, b3 = params
    xt = jnp.transpose(x, (0, 2, 1))  # (B, T, 20)
    h = jnp.tanh(xt @ w1 + b1)
    h = jnp.tanh(h @ w2 + b2)
    y = h @ w3 + b3
    return jnp.transpose(y, (0, 2, 1))  # (B, 5, T)


if __name__ == "__main__":
    key = jax.random.PRNGKey(0)
    k_param, k_x1, k_x2 = jax.random.split(key, 3)
    params = init_params(k_param)

    # Case 1: small canonical shape (ragged T-tile path: T=16 < tile_t=128).
    B, T = 2, 16
    x = jax.random.normal(k_x1, (B, IN_DIM, T), dtype=jnp.float32)
    lengths = jnp.full((B,), T, dtype=jnp.int32)
    out = jax.block_until_ready(network_model_forward(x, lengths, params))
    ref = _reference(x, params)
    assert out.shape == (B, OUT_DIM, T), out.shape
    assert jnp.allclose(out, ref, atol=1e-5, rtol=1e-5), "mismatch vs reference (case 1)"

    # Case 2: exercises batch folding (bb=2) + ragged batch block + ragged T-tile.
    B2, T2 = 3, 300
    x2 = jax.random.normal(k_x2, (B2, IN_DIM, T2), dtype=jnp.float32)
    lengths2 = jnp.full((B2,), T2, dtype=jnp.int32)
    out2 = jax.block_until_ready(network_model_forward(x2, lengths2, params))
    ref2 = _reference(x2, params)
    assert out2.shape == (B2, OUT_DIM, T2), out2.shape
    assert jnp.allclose(out2, ref2, atol=1e-5, rtol=1e-5), "mismatch vs reference (case 2)"

    print("KERNEL_OK")
</pallas_src>

<mosaic_0001>
module attributes {stable_mosaic.version = 11 : i64} {
  func.func @_mlp_kernel(%arg0: i32, %arg1: i32, %arg2: memref<1x20x128xf32, #tpu.memory_space<vmem>>, %arg3: memref<100x20xf32, #tpu.memory_space<vmem>>, %arg4: memref<100x1xf32, #tpu.memory_space<vmem>>, %arg5: memref<50x100xf32, #tpu.memory_space<vmem>>, %arg6: memref<50x1xf32, #tpu.memory_space<vmem>>, %arg7: memref<5x50xf32, #tpu.memory_space<vmem>>, %arg8: memref<5x1xf32, #tpu.memory_space<vmem>>, %arg9: memref<1x5x128xf32, #tpu.memory_space<vmem>>) attributes {dimension_semantics = [#tpu.dimension_semantics<parallel>, #tpu.dimension_semantics<parallel>], iteration_bounds = array<i64: 2, 1>, scalar_prefetch = 0 : i64, scratch_operands = 0 : i64, tpu.core_type = #tpu.core_type<tc>, window_params = [{transform_indices = @transform_0, window_bounds = array<i64: 1, 20, 128>}, {pipeline_mode = #tpu.pipeline_mode<synchronous>, transform_indices = @transform_1, window_bounds = array<i64: 100, 20>}, {pipeline_mode = #tpu.pipeline_mode<synchronous>, transform_indices = @transform_2, window_bounds = array<i64: 100, 1>}, {pipeline_mode = #tpu.pipeline_mode<synchronous>, transform_indices = @transform_3, window_bounds = array<i64: 50, 100>}, {pipeline_mode = #tpu.pipeline_mode<synchronous>, transform_indices = @transform_4, window_bounds = array<i64: 50, 1>}, {pipeline_mode = #tpu.pipeline_mode<synchronous>, transform_indices = @transform_5, window_bounds = array<i64: 5, 50>}, {pipeline_mode = #tpu.pipeline_mode<synchronous>, transform_indices = @transform_6, window_bounds = array<i64: 5, 1>}, {transform_indices = @transform_7, window_bounds = array<i64: 1, 5, 128>}]} {
    %c0 = arith.constant 0 : index
    %c0_0 = arith.constant 0 : index
    %0 = vector.load %arg3[%c0, %c0_0] : memref<100x20xf32, #tpu.memory_space<vmem>>, vector<100x20xf32>
    %c0_1 = arith.constant 0 : index
    %c0_2 = arith.constant 0 : index
    %1 = vector.load %arg4[%c0_1, %c0_2] : memref<100x1xf32, #tpu.memory_space<vmem>>, vector<100x1xf32>
    %c0_3 = arith.constant 0 : index
    %c0_4 = arith.constant 0 : index
    %2 = vector.load %arg5[%c0_3, %c0_4] : memref<50x100xf32, #tpu.memory_space<vmem>>, vector<50x100xf32>
    %c0_5 = arith.constant 0 : index
    %c0_6 = arith.constant 0 : index
    %3 = vector.load %arg6[%c0_5, %c0_6] : memref<50x1xf32, #tpu.memory_space<vmem>>, vector<50x1xf32>
    %c0_7 = arith.constant 0 : index
    %c0_8 = arith.constant 0 : index
    %4 = vector.load %arg7[%c0_7, %c0_8] : memref<5x50xf32, #tpu.memory_space<vmem>>, vector<5x50xf32>
    %c0_9 = arith.constant 0 : index
    %c0_10 = arith.constant 0 : index
    %5 = vector.load %arg8[%c0_9, %c0_10] : memref<5x1xf32, #tpu.memory_space<vmem>>, vector<5x1xf32>
    %c0_11 = arith.constant 0 : index
    %c0_12 = arith.constant 0 : index
    %c0_13 = arith.constant 0 : index
    %6 = vector.load %arg2[%c0_11, %c0_12, %c0_13] : memref<1x20x128xf32, #tpu.memory_space<vmem>>, vector<1x20x128xf32>
    %7 = vector.shape_cast %6 : vector<1x20x128xf32> to vector<20x128xf32>
    %cst = arith.constant dense<0.000000e+00> : vector<100x128xf32>
    %8 = tpu.matmul %0, %7, %cst {dimension_numbers = #tpu.dot_dimension_numbers<[1], [0], [0], [1], [0, 0, 1, 1], [], []>} : vector<100x20xf32>, vector<20x128xf32>, vector<100x128xf32> -> vector<100x128xf32>
    %9 = vector.broadcast %1 : vector<100x1xf32> to vector<100x128xf32>
    %10 = arith.addf %8, %9 : vector<100x128xf32>
    %11 = math.tanh %10 : vector<100x128xf32>
    %cst_14 = arith.constant dense<0.000000e+00> : vector<50x128xf32>
    %12 = tpu.matmul %2, %11, %cst_14 {dimension_numbers = #tpu.dot_dimension_numbers<[1], [0], [0], [1], [0, 0, 1, 1], [], []>} : vector<50x100xf32>, vector<100x128xf32>, vector<50x128xf32> -> vector<50x128xf32>
    %13 = vector.broadcast %3 : vector<50x1xf32> to vector<50x128xf32>
    %14 = arith.addf %12, %13 : vector<50x128xf32>
    %15 = math.tanh %14 : vector<50x128xf32>
    %cst_15 = arith.constant dense<0.000000e+00> : vector<5x128xf32>
    %16 = tpu.matmul %4, %15, %cst_15 {dimension_numbers = #tpu.dot_dimension_numbers<[1], [0], [0], [1], [0, 0, 1, 1], [], []>} : vector<5x50xf32>, vector<50x128xf32>, vector<5x128xf32> -> vector<5x128xf32>
    %17 = vector.broadcast %5 : vector<5x1xf32> to vector<5x128xf32>
    %18 = arith.addf %16, %17 : vector<5x128xf32>
    %c0_16 = arith.constant 0 : index
    %c0_17 = arith.constant 0 : index
    %c0_18 = arith.constant 0 : index
    %19 = vector.load %arg9[%c0_16, %c0_17, %c0_18] : memref<1x5x128xf32, #tpu.memory_space<vmem>>, vector<1x5x128xf32>
    %20 = vector.shape_cast %19 : vector<1x5x128xf32> to vector<5x128xf32>
    %21 = vector.shape_cast %18 : vector<5x128xf32> to vector<1x5x128xf32>
    tpu.vector_store %arg9[%c0_16, %c0_17, %c0_18], %21 {strides = array<i32>} : memref<1x5x128xf32, #tpu.memory_space<vmem>>, vector<1x5x128xf32>,
    return
  }
  func.func @transform_0(%arg0: i32, %arg1: i32) -> (i32, i32, i32) {
    %c0_i32 = arith.constant 0 : i32
    %c0_i32_0 = arith.constant 0 : i32
    return %arg0, %c0_i32, %arg1 : i32, i32, i32
  }
  func.func @transform_1(%arg0: i32, %arg1: i32) -> (i32, i32) {
    %c0_i32 = arith.constant 0 : i32
    %c0_i32_0 = arith.constant 0 : i32
    %c0_i32_1 = arith.constant 0 : i32
    return %c0_i32, %c0_i32_0 : i32, i32
  }
  func.func @transform_2(%arg0: i32, %arg1: i32) -> (i32, i32) {
    %c0_i32 = arith.constant 0 : i32
    %c0_i32_0 = arith.constant 0 : i32
    %c0_i32_1 = arith.constant 0 : i32
    return %c0_i32, %c0_i32_0 : i32, i32
  }
  func.func @transform_3(%arg0: i32, %arg1: i32) -> (i32, i32) {
    %c0_i32 = arith.constant 0 : i32
    %c0_i32_0 = arith.constant 0 : i32
    %c0_i32_1 = arith.constant 0 : i32
    return %c0_i32, %c0_i32_0 : i32, i32
  }
  func.func @transform_4(%arg0: i32, %arg1: i32) -> (i32, i32) {
    %c0_i32 = arith.constant 0 : i32
    %c0_i32_0 = arith.constant 0 : i32
    %c0_i32_1 = arith.constant 0 : i32
    return %c0_i32, %c0_i32_0 : i32, i32
  }
  func.func @transform_5(%arg0: i32, %arg1: i32) -> (i32, i32) {
    %c0_i32 = arith.constant 0 : i32
    %c0_i32_0 = arith.constant 0 : i32
    %c0_i32_1 = arith.constant 0 : i32
    return %c0_i32, %c0_i32_0 : i32, i32
  }
  func.func @transform_6(%arg0: i32, %arg1: i32) -> (i32, i32) {
    %c0_i32 = arith.constant 0 : i32
    %c0_i32_0 = arith.constant 0 : i32
    %c0_i32_1 = arith.constant 0 : i32
    return %c0_i32, %c0_i32_0 : i32, i32
  }
  func.func @transform_7(%arg0: i32, %arg1: i32) -> (i32, i32, i32) {
    %c0_i32 = arith.constant 0 : i32
    %c0_i32_0 = arith.constant 0 : i32
    return %arg0, %c0_i32, %arg1 : i32, i32, i32
  }
}

</mosaic_0001>

<llo_original>
// kernel: network_model_forward.1
$region0: #{network_model_forward.1}
  #allocation0 [shape = 'u32[]', space=smem, size = 0x4, offset = 0x4, fixed_abs, tag = 'smem constant byte address 0x4 - core index']
  #allocation1 [shape = 'u32[144,128]{1,0:T(1,128)}', space=vmem, size = 0x12000, scoped, tag = 'internal scratch']
  %s0 = inlined_call_operand.vmem [shape: f32[2,20,16], index: 0, kind: input, shape index: {}]
  %s1 = inlined_call_operand.vmem [shape: f32[100,20], index: 1, kind: input, shape index: {}]
  %s2 = inlined_call_operand.vmem [shape: f32[100,1], index: 2, kind: input, shape index: {}]
  %s3 = inlined_call_operand.vmem [shape: f32[50,100], index: 3, kind: input, shape index: {}]
  %s4 = inlined_call_operand.vmem [shape: f32[50,1], index: 4, kind: input, shape index: {}]
  %s5 = inlined_call_operand.vmem [shape: f32[5,50], index: 5, kind: input, shape index: {}]
  %s6 = inlined_call_operand.vmem [shape: f32[5,1], index: 6, kind: input, shape index: {}]
  %s7 = inlined_call_operand.vmem [shape: f32[2,5,16], index: 7, kind: output, shape index: {}]
  %s8 = sld [smem:[#allocation0]]
  $region61: #{network_model_forward.1} parent=0
    _
  %s10 = ssub.s32 1, %s8
  %s11 = scalar_select 0, %s10, %s8
  loop: start=0, step=1, limit=4
  $region2: #{network_model_forward.1} parent=0 // loop_pre_header
    _
  $region3: #{network_model_forward.1} parent=0 // loop_header
    %s13 = sphi 0, %s17
    %p14 = scmp.ge.s32.totalorder %s13, 4
    %s20 = sphi 0, %s32
    %s21 = sphi 0, %s28
    %s22 = sphi 0, %s20
    %s23 = sphi 0, %s21
    %s24 = sphi 0, %s22
    %s25 = sphi 0, %s23
    %s37 = sphi 0, %s39
    %s40 = sphi 0, %s37
    %s41 = sphi 0, %s40
    %s57 = sphi 0, %s41
    %s61 = sphi 0, %s61
    %s63 = sphi 0, %s61
    %s64 = sphi 0, %s63
    %s78 = sphi 0, %s64
    %s82 = sphi 0, %s82
    %s84 = sphi 0, %s82
    %s85 = sphi 0, %s84
    %s99 = sphi 0, %s85
    %s103 = sphi 0, %s103
    %s105 = sphi 0, %s103
    %s106 = sphi 0, %s105
    %s120 = sphi 0, %s106
    %s124 = sphi 0, %s124
    %s126 = sphi 0, %s124
    %s127 = sphi 0, %s126
    %s141 = sphi 0, %s127
    %s145 = sphi 0, %s145
    %s147 = sphi 0, %s145
    %s148 = sphi 0, %s147
    %s162 = sphi 0, %s148
    %s166 = sphi 0, %s166
    %s168 = sphi 0, %s166
    %s169 = sphi 0, %s168
    %s183 = sphi 0, %s169
    %s191 = sphi 0, %s193
    %s194 = sphi 0, %s191
    %s195 = sphi 0, %s194
    %s211 = sphi 0, %s195
  $region4: #{network_model_forward.1} parent=0 // loop_header_branch
    %16 = sbr.rel (%p14) target = $region8
  $region5: #{network_model_forward.1} parent=0 // loop_body
    %s18 = ssub.s32 %s13, 1
    %s19 = ssub.s32 %s13, 2
    %s26 = sadd.s32 1, %s21
    %p27 = scmp.ge.s32.totalorder %s26, 1
    %s28 = scalar_select %p27, 0, %s26
    %s29 = sadd.s32 1, %s20
    %s30 = scalar_select %p27, %s29, %s20
    %p31 = scmp.ge.s32.totalorder %s30, 2
    %s32 = scalar_select %p31, 0, %s30
    %s33 = ssub.s32 %s20, %s32
    %s34 = ssub.s32 %s21, %s28
    %s35 = sor.u32 %s33, %s34
    %p36 = scmp.eq.s32.totalorder %s35, 0
    %s38 = sadd.s32 %s37, 1
    %s39 = scalar_select %p36, %s37, %s38
    %p42 = pneg %p36
    %p43 = scmp.eq.s32.totalorder %s13, 1
    %p44 = por %p42, %p43
    %p45 = scmp.ne.s32.totalorder %s37, %s40
    %p46 = scmp.eq.s32.totalorder %s13, 0
    %p47 = por %p45, %p46
    %p48 = scmp.ne.s32.totalorder %s37, %s40
    %p49 = scmp.eq.s32.totalorder %s18, 1
    %p50 = por %p48, %p49
    %p51 = scmp.ne.s32.totalorder %s40, %s41
    %p52 = scmp.eq.s32.totalorder %s18, 0
    %p53 = por %p51, %p52
    %p54 = scmp.ne.s32.totalorder %s40, %s41
    %p55 = scmp.eq.s32.totalorder %s19, 1
    %p56 = por %p54, %p55
    %p58 = scmp.ne.s32.totalorder %s41, %s57
    %p59 = scmp.eq.s32.totalorder %s19, 0
    %p60 = por %p58, %p59
    %s62 = sadd.s32 %s61, 1
    %p65 = scmp.eq.s32.totalorder %s13, 1
    %p66 = scmp.ne.s32.totalorder %s61, %s63
    %p67 = scmp.eq.s32.totalorder %s13, 0
    %p68 = por %p66, %p67
    %p69 = scmp.ne.s32.totalorder %s61, %s63
    %p70 = scmp.eq.s32.totalorder %s18, 1
    %p71 = por %p69, %p70
    %p72 = scmp.ne.s32.totalorder %s63, %s64
    %p73 = scmp.eq.s32.totalorder %s18, 0
    %p74 = por %p72, %p73
    %p75 = scmp.ne.s32.totalorder %s63, %s64
    %p76 = scmp.eq.s32.totalorder %s19, 1
    %p77 = por %p75, %p76
    %p79 = scmp.ne.s32.totalorder %s64, %s78
    %p80 = scmp.eq.s32.totalorder %s19, 0
    %p81 = por %p79, %p80
    %s83 = sadd.s32 %s82, 1
    %p86 = scmp.eq.s32.totalorder %s13, 1
    %p87 = scmp.ne.s32.totalorder %s82, %s84
    %p88 = scmp.eq.s32.totalorder %s13, 0
    %p89 = por %p87, %p88
    %p90 = scmp.ne.s32.totalorder %s82, %s84
    %p91 = scmp.eq.s32.totalorder %s18, 1
    %p92 = por %p90, %p91
    %p93 = scmp.ne.s32.totalorder %s84, %s85
    %p94 = scmp.eq.s32.totalorder %s18, 0
    %p95 = por %p93, %p94
    %p96 = scmp.ne.s32.totalorder %s84, %s85
    %p97 = scmp.eq.s32.totalorder %s19, 1
    %p98 = por %p96, %p97
    %p100 = scmp.ne.s32.totalorder %s85, %s99
    %p101 = scmp.eq.s32.totalorder %s19, 0
    %p102 = por %p100, %p101
    %s104 = sadd.s32 %s103, 1
    %p107 = scmp.eq.s32.totalorder %s13, 1
    %p108 = scmp.ne.s32.totalorder %s103, %s105
    %p109 = scmp.eq.s32.totalorder %s13, 0
    %p110 = por %p108, %p109
    %p111 = scmp.ne.s32.totalorder %s103, %s105
    %p112 = scmp.eq.s32.totalorder %s18, 1
    %p113 = por %p111, %p112
    %p114 = scmp.ne.s32.totalorder %s105, %s106
    %p115 = scmp.eq.s32.totalorder %s18, 0
    %p116 = por %p114, %p115
    %p117 = scmp.ne.s32.totalorder %s105, %s106
    %p118 = scmp.eq.s32.totalorder %s19, 1
    %p119 = por %p117, %p118
    %p121 = scmp.ne.s32.totalorder %s106, %s120
    %p122 = scmp.eq.s32.totalorder %s19, 0
    %p123 = por %p121, %p122
    %s125 = sadd.s32 %s124, 1
    %p128 = scmp.eq.s32.totalorder %s13, 1
    %p129 = scmp.ne.s32.totalorder %s124, %s126
    %p130 = scmp.eq.s32.totalorder %s13, 0
    %p131 = por %p129, %p130
    %p132 = scmp.ne.s32.totalorder %s124, %s126
    %p133 = scmp.eq.s32.totalorder %s18, 1
    %p134 = por %p132, %p133
    %p135 = scmp.ne.s32.totalorder %s126, %s127
    %p136 = scmp.eq.s32.totalorder %s18, 0
    %p137 = por %p135, %p136
    %p138 = scmp.ne.s32.totalorder %s126, %s127
    %p139 = scmp.eq.s32.totalorder %s19, 1
    %p140 = por %p138, %p139
    %p142 = scmp.ne.s32.totalorder %s127, %s141
    %p143 = scmp.eq.s32.totalorder %s19, 0
    %p144 = por %p142, %p143
    %s146 = sadd.s32 %s145, 1
    %p149 = scmp.eq.s32.totalorder %s13, 1
    %p150 = scmp.ne.s32.totalorder %s145, %s147
    %p151 = scmp.eq.s32.totalorder %s13, 0
    %p152 = por %p150, %p151
    %p153 = scmp.ne.s32.totalorder %s145, %s147
    %p154 = scmp.eq.s32.totalorder %s18, 1
    %p155 = por %p153, %p154
    %p156 = scmp.ne.s32.totalorder %s147, %s148
    %p157 = scmp.eq.s32.totalorder %s18, 0
    %p158 = por %p156, %p157
    %p159 = scmp.ne.s32.totalorder %s147, %s148
    %p160 = scmp.eq.s32.totalorder %s19, 1
    %p161 = por %p159, %p160
    %p163 = scmp.ne.s32.totalorder %s148, %s162
    %p164 = scmp.eq.s32.totalorder %s19, 0
    %p165 = por %p163, %p164
    %s167 = sadd.s32 %s166, 1
    %p170 = scmp.eq.s32.totalorder %s13, 1
    %p171 = scmp.ne.s32.totalorder %s166, %s168
    %p172 = scmp.eq.s32.totalorder %s13, 0
    %p173 = por %p171, %p172
    %p174 = scmp.ne.s32.totalorder %s166, %s168
    %p175 = scmp.eq.s32.totalorder %s18, 1
    %p176 = por %p174, %p175
    %p177 = scmp.ne.s32.totalorder %s168, %s169
    %p178 = scmp.eq.s32.totalorder %s18, 0
    %p179 = por %p177, %p178
    %p180 = scmp.ne.s32.totalorder %s168, %s169
    %p181 = scmp.eq.s32.totalorder %s19, 1
    %p182 = por %p180, %p181
    %p184 = scmp.ne.s32.totalorder %s169, %s183
    %p185 = scmp.eq.s32.totalorder %s19, 0
    %p186 = por %p184, %p185
    %s187 = ssub.s32 %s20, %s32
    %s188 = ssub.s32 %s21, %s28
    %s189 = sor.u32 %s187, %s188
    %p190 = scmp.eq.s32.totalorder %s189, 0
    %s192 = sadd.s32 %s191, 1
    %s193 = scalar_select %p190, %s191, %s192
    %p196 = pneg %p190
    %p197 = scmp.eq.s32.totalorder %s13, 1
    %p198 = por %p196, %p197
    %p199 = scmp.ne.s32.totalorder %s191, %s194
    %p200 = scmp.eq.s32.totalorder %s13, 0
    %p201 = por %p199, %p200
    %p202 = scmp.ne.s32.totalorder %s191, %s194
    %p203 = scmp.eq.s32.totalorder %s18, 1
    %p204 = por %p202, %p203
    %p205 = scmp.ne.s32.totalorder %s194, %s195
    %p206 = scmp.eq.s32.totalorder %s18, 0
    %p207 = por %p205, %p206
    %p208 = scmp.ne.s32.totalorder %s194, %s195
    %p209 = scmp.eq.s32.totalorder %s19, 1
    %p210 = por %p208, %p209
    %p212 = scmp.ne.s32.totalorder %s195, %s211
    %p213 = scmp.eq.s32.totalorder %s19, 0
    %p214 = por %p212, %p213
    %p215 = scmp.le.s32.totalorder 1, %s13
    %p216 = scmp.lt.s32.totalorder %s13, 3
    %p217 = pnand %p215, %p216
    %p218 = pneg %p217
    // Predicated region
    $region9: #{network_model_forward.1} parent=5 // pred_check
      _
    $region10: #{network_model_forward.1} parent=5 // pred_check_branch
      %220 = sbr.rel (%p217) target = $region12
    $region11: #{network_model_forward.1} parent=5 // pred_region
      %s221 = ssub.s32 %s13, 1
      // Predicated region
      $region13: #{network_model_forward.1} parent=11 // pred_check
        %p222 = pneg %p74
      $region14: #{network_model_forward.1} parent=11 // pred_check_branch
        %224 = sbr.rel (%p222) target = $region16
      $region15: #{network_model_forward.1} parent=11 // pred_region
        _
      $region16: #{network_model_forward.1} parent=11 // pred_fallthru
        _
      // Predicated region
      $region17: #{network_model_forward.1} parent=11 // pred_check
        %p225 = pneg %p95
      $region18: #{network_model_forward.1} parent=11 // pred_check_branch
        %227 = sbr.rel (%p225) target = $region20
      $region19: #{network_model_forward.1} parent=11 // pred_region
        _
      $region20: #{network_model_forward.1} parent=11 // pred_fallthru
        _
      // Predicated region
      $region21: #{network_model_forward.1} parent=11 // pred_check
        %p228 = pneg %p116
      $region22: #{network_model_forward.1} parent=11 // pred_check_branch
        %230 = sbr.rel (%p228) target = $region24
      $region23: #{network_model_forward.1} parent=11 // pred_region
        _
      $region24: #{network_model_forward.1} parent=11 // pred_fallthru
        _
      // Predicated region
      $region25: #{network_model_forward.1} parent=11 // pred_check
        %p231 = pneg %p137
      $region26: #{network_model_forward.1} parent=11 // pred_check_branch
        %233 = sbr.rel (%p231) target = $region28
      $region27: #{network_model_forward.1} parent=11 // pred_region
        _
      $region28: #{network_model_forward.1} parent=11 // pred_fallthru
        _
      // Predicated region
      $region29: #{network_model_forward.1} parent=11 // pred_check
        %p234 = pneg %p158
      $region30: #{network_model_forward.1} parent=11 // pred_check_branch
        %236 = sbr.rel (%p234) target = $region32
      $region31: #{network_model_forward.1} parent=11 // pred_region
        _
      $region32: #{network_model_forward.1} parent=11 // pred_fallthru
        _
      // Predicated region
      $region33: #{network_model_forward.1} parent=11 // pred_check
        %p237 = pneg %p179
      $region34: #{network_model_forward.1} parent=11 // pred_check_branch
        %239 = sbr.rel (%p237) target = $region36
      $region35: #{network_model_forward.1} parent=11 // pred_region
        _
      $region36: #{network_model_forward.1} parent=11 // pred_fallthru
        _
    $region12: #{network_model_forward.1} parent=5 // pred_fallthru
      _
    %p240 = scmp.lt.s32.totalorder %s13, 2
    // Predicated region
    $region37: #{network_model_forward.1} parent=5 // pred_check
      %p241 = pneg %p240
    $region38: #{network_model_forward.1} parent=5 // pred_check_branch
      %243 = sbr.rel (%p241) target = $region40
    $region39: #{network_model_forward.1} parent=5 // pred_region
      // Predicated region
      $region41: #{network_model_forward.1} parent=39 // pred_check
        %p244 = pneg %p47
      $region42: #{network_model_forward.1} parent=39 // pred_check_branch
        %246 = sbr.rel (%p244) target = $region44
      $region43: #{network_model_forward.1} parent=39 // pred_region
        %p247 = scmp.lt.s32.totalorder %s20, 1
        %s248 = scalar_select %p247, %s20, 1
        %p249 = scmp.lt.s32.totalorder %s21, 0
        %s250 = scalar_select %p249, %s21, 0
        %s251 = smul.addr %s248, 3
        %s252 = sadd.s32 %s250, %s251
        %s253 = smul.addr %s252, 8
        %s254 = scalar_lea.vmem %s0, %s253
      $region44: #{network_model_forward.1} parent=39 // pred_fallthru
        _
    $region40: #{network_model_forward.1} parent=5 // pred_fallthru
      _
    %p255 = scmp.le.s32.totalorder 1, %s13
    %p256 = scmp.lt.s32.totalorder %s13, 3
    %p257 = pnand %p255, %p256
    %p258 = pneg %p257
    // Predicated region
    $region45: #{network_model_forward.1} parent=5 // pred_check
      _
    $region46: #{network_model_forward.1} parent=5 // pred_check_branch
      %260 = sbr.rel (%p257) target = $region48
    $region47: #{network_model_forward.1} parent=5 // pred_region
      %s261 = ssub.s32 %s13, 1
      %p262 = scmp.lt.s32.totalorder %s22, 1
      %s263 = scalar_select %p262, %s22, 1
      %p264 = scmp.lt.s32.totalorder %s23, 0
      %s265 = scalar_select %p264, %s23, 0
      %s266 = smul.addr %s263, 3
      %s267 = sadd.s32 %s265, %s266
      %s268 = smul.addr %s267, 8
      %s269 = scalar_lea.vmem %s0, %s268
      %p270 = pneg %p53
      %p271 = pneg %p50
      %p272 = pneg %p74
      %p273 = pneg %p71
      %p274 = pneg %p95
      %p275 = pneg %p92
      %p276 = pneg %p116
      %p277 = pneg %p113
      %p278 = pneg %p137
      %p279 = pneg %p134
      %p280 = pneg %p158
      %p281 = pneg %p155
      %p282 = pneg %p179
      %p283 = pneg %p176
      %p284 = pneg %p207
      %p285 = pneg %p204
      %p286 = scmp.lt.s32.totalorder %s22, 1
      %s287 = scalar_select %p286, %s22, 1
      %p288 = scmp.lt.s32.totalorder %s23, 0
      %s289 = scalar_select %p288, %s23, 0
      %s290 = sadd.s32 %s289, %s287
      %s291 = smul.addr %s290, 8
      %s292 = scalar_lea.vmem %s7, %s291
      %p293 = scmp.lt.s32.totalorder %s22, 1
      %s294 = scalar_select %p293, %s22, 1
      %p295 = scmp.lt.s32.totalorder %s23, 0
      %s296 = scalar_select %p295, %s23, 0
      %s297 = smul.addr %s294, 3
      %s298 = sadd.s32 %s296, %s297
      %s299 = smul.addr %s298, 8
      %s300 = scalar_lea.vmem %s0, %s299
      %p301 = scmp.lt.s32.totalorder %s22, 1
      %s302 = scalar_select %p301, %s22, 1
      %p303 = scmp.lt.s32.totalorder %s23, 0
      %s304 = scalar_select %p303, %s23, 0
      %s305 = sadd.s32 %s304, %s302
      %s306 = smul.addr %s305, 8
      %s307 = scalar_lea.vmem %s7, %s306
      %v308 = vld [vmem:[%s1] sm:$0xff]
      %v309 = vld [vmem:[%s1 + $0x8] sm:$0xff]
      %v310 = vld [vmem:[%s1 + $0x10] sm:$0xff]
      %v311 = vld [vmem:[%s1 + $0x18] sm:$0xff]
      %v312 = vld [vmem:[%s1 + $0x20] sm:$0xff]
      %v313 = vld [vmem:[%s1 + $0x28] sm:$0xff]
      %v314 = vld [vmem:[%s1 + $0x30] sm:$0xff]
      %v315 = vld [vmem:[%s1 + $0x38] sm:$0xff]
      %v316 = vld [vmem:[%s1 + $0x40] sm:$0xff]
      %v317 = vld [vmem:[%s1 + $0x48] sm:$0xff]
      %v318 = vld [vmem:[%s1 + $0x50] sm:$0xff]
      %v319 = vld [vmem:[%s1 + $0x58] sm:$0xff]
      %v320 = vld [vmem:[%s1 + $0x60] sm:$0xf]
      %v321 = vld [vmem:[%s2] sm:$0xff]
      %v322 = vld [vmem:[%s2 + $0x8] sm:$0xff]
      %v323 = vld [vmem:[%s2 + $0x10] sm:$0xff]
      %v324 = vld [vmem:[%s2 + $0x18] sm:$0xff]
      %v325 = vld [vmem:[%s2 + $0x20] sm:$0xff]
      %v326 = vld [vmem:[%s2 + $0x28] sm:$0xff]
      %v327 = vld [vmem:[%s2 + $0x30] sm:$0xff]
      %v328 = vld [vmem:[%s2 + $0x38] sm:$0xff]
      %v329 = vld [vmem:[%s2 + $0x40] sm:$0xff]
      %v330 = vld [vmem:[%s2 + $0x48] sm:$0xff]
      %v331 = vld [vmem:[%s2 + $0x50] sm:$0xff]
      %v332 = vld [vmem:[%s2 + $0x58] sm:$0xff]
      %v333 = vld [vmem:[%s2 + $0x60] sm:$0xf]
      %v334 = vld [vmem:[%s3] sm:$0xff]
      %v335 = vld [vmem:[%s3 + $0x8] sm:$0xff]
      %v336 = vld [vmem:[%s3 + $0x10] sm:$0xff]
      %v337 = vld [vmem:[%s3 + $0x18] sm:$0xff]
      %v338 = vld [vmem:[%s3 + $0x20] sm:$0xff]
      %v339 = vld [vmem:[%s3 + $0x28] sm:$0xff]
      %v340 = vld [vmem:[%s3 + $0x30] sm:$0x3]
      %v341 = vld [vmem:[%s4] sm:$0xff]
      %v342 = vld [vmem:[%s4 + $0x8] sm:$0xff]
      %v343 = vld [vmem:[%s4 + $0x10] sm:$0xff]
      %v344 = vld [vmem:[%s4 + $0x18] sm:$0xff]
      %v345 = vld [vmem:[%s4 + $0x20] sm:$0xff]
      %v346 = vld [vmem:[%s4 + $0x28] sm:$0xff]
      %v347 = vld [vmem:[%s4 + $0x30] sm:$0x3]
      %v348 = vld [vmem:[%s5] sm:$0x1f]
      %v349 = vld [vmem:[%s6] sm:$0x1f]
      %v350 = vld [vmem:[%s300] sm:$0xff]
      %v351 = vld [vmem:[%s300 + $0x8] sm:$0xff]
      %v352 = vld [vmem:[%s300 + $0x10] sm:$0xf]
      %354 = vset.pattern.permute.xlu0 0
      %355 = vperm.xlu0 %354, %v321
      %v356 = vpop.permute.xlu0 %355
      %359 = vset.pattern.permute.xlu0 0
      %360 = vperm.xlu0 %359, %v322
      %v361 = vpop.permute.xlu0 %360
      %364 = vset.pattern.permute.xlu0 0
      %365 = vperm.xlu0 %364, %v323
      %v366 = vpop.permute.xlu0 %365
      %369 = vset.pattern.permute.xlu0 0
      %370 = vperm.xlu0 %369, %v324
      %v371 = vpop.permute.xlu0 %370
      %374 = vset.pattern.permute.xlu0 0
      %375 = vperm.xlu0 %374, %v325
      %v376 = vpop.permute.xlu0 %375
      %379 = vset.pattern.permute.xlu0 0
      %380 = vperm.xlu0 %379, %v326
      %v381 = vpop.permute.xlu0 %380
      %384 = vset.pattern.permute.xlu0 0
      %385 = vperm.xlu0 %384, %v327
      %v386 = vpop.permute.xlu0 %385
      %389 = vset.pattern.permute.xlu0 0
      %390 = vperm.xlu0 %389, %v328
      %v391 = vpop.permute.xlu0 %390
      %394 = vset.pattern.permute.xlu0 0
      %395 = vperm.xlu0 %394, %v329
      %v396 = vpop.permute.xlu0 %395
      %399 = vset.pattern.permute.xlu0 0
      %400 = vperm.xlu0 %399, %v330
      %v401 = vpop.permute.xlu0 %400
      %404 = vset.pattern.permute.xlu0 0
      %405 = vperm.xlu0 %404, %v331
      %v406 = vpop.permute.xlu0 %405
      %409 = vset.pattern.permute.xlu0 0
      %410 = vperm.xlu0 %409, %v332
      %v411 = vpop.permute.xlu0 %410
      %414 = vset.pattern.permute.xlu0 0
      %415 = vperm.xlu0 %414, %v333
      %v416 = vpop.permute.xlu0 %415
      %vm418 = vcmask 162816
      %v420 = vsel %vm418, %v308, 0
      %v423 = vsel %vm418, %v309, 0
      %v426 = vsel %vm418, %v310, 0
      %v429 = vsel %vm418, %v311, 0
      %v432 = vsel %vm418, %v312, 0
      %v435 = vsel %vm418, %v313, 0
      %v438 = vsel %vm418, %v314, 0
      %v441 = vsel %vm418, %v315, 0
      %v444 = vsel %vm418, %v316, 0
      %v447 = vsel %vm418, %v317, 0
      %v450 = vsel %vm418, %v318, 0
      %v453 = vsel %vm418, %v319, 0
      %v456 = vsel %vm418, %v320, 0
      %vm458 = vcmask 1043456
      %v460 = vsel %vm458, %v352, 0
      %462 = vmatprep.subr.mxu0 0.0
      %463 = vmatpush1.msra.mxu0 %v350
      %464 = vmatprep.subr.mxu0 0.0
      %465 = vmatpush1.msra.mxu0 %v351
      %466 = vmatprep.subr.mxu0 0.0
      %467 = vmatpush1.msra.mxu0 %v460
      %468 = vmatprep.subr.mxu0 0.0
      %469 = vmatpush1.msra.mxu0 0.0
      %470 = vmatprep.subr.mxu0 0.0
      %471 = vmatpush1.msra.mxu0 0.0
      %472 = vmatprep.subr.mxu0 0.0
      %473 = vmatpush1.msra.mxu0 0.0
      %474 = vmatprep.subr.mxu0 0.0
      %475 = vmatpush1.msra.mxu0 0.0
      %476 = vmatprep.subr.mxu0 0.0
      %477 = vmatpush1.msra.mxu0 0.0
      %478 = vmatprep.subr.mxu0 0.0
      %479 = vmatpush1.msra.mxu0 0.0
      %480 = vmatprep.subr.mxu0 0.0
      %481 = vmatpush1.msra.mxu0 0.0
      %482 = vmatprep.subr.mxu0 0.0
      %483 = vmatpush1.msra.mxu0 0.0
      %484 = vmatprep.subr.mxu0 0.0
      %485 = vmatpush1.msra.mxu0 0.0
      %486 = vmatprep.subr.mxu0 0.0
      %487 = vmatpush1.msra.mxu0 0.0
      %488 = vmatprep.subr.mxu0 0.0
      %489 = vmatpush1.msra.mxu0 0.0
      %490 = vmatprep.subr.mxu0 0.0
      %491 = vmatpush1.msra.mxu0 0.0
      %492 = vmatprep.subr.mxu0 0.0
      %493 = vmatpush1.msra.mxu0 0.0
      %494 = vmatprep.subr.mxu0 0.0
      %495 = vmatpush1.msra.mxu0 0.0
      %496 = vmatprep.subr.mxu0 0.0
      %497 = vmatpush1.msra.mxu0 0.0
      %498 = vmatprep.subr.mxu0 0.0
      %499 = vmatpush1.msra.mxu0 0.0
      %500 = vmatprep.subr.mxu0 0.0
      %501 = vmatpush1.msra.mxu0 0.0
      %502 = vmatprep.subr.mxu0 0.0
      %503 = vmatpush1.msra.mxu0 0.0
      %504 = vmatprep.subr.mxu0 0.0
      %505 = vmatpush1.msra.mxu0 0.0
      %506 = vmatprep.subr.mxu0 0.0
      %507 = vmatpush1.msra.mxu0 0.0
      %508 = vmatprep.subr.mxu0 0.0
      %509 = vmatpush1.msra.mxu0 0.0
      %510 = vmatprep.subr.mxu0 0.0
      %511 = vmatpush1.msra.mxu0 0.0
      %512 = vmatprep.subr.mxu0 0.0
      %513 = vmatpush1.msra.mxu0 0.0
      %514 = vmatprep.subr.mxu0 0.0
      %515 = vmatpush1.msra.mxu0 0.0
      %516 = vmatprep.subr.mxu0 0.0
      %517 = vmatpush1.msra.mxu0 0.0
      %518 = vmatprep.subr.mxu0 0.0
      %519 = vmatpush1.msra.mxu0 0.0
      %520 = vmatprep.subr.mxu0 0.0
      %521 = vmatpush1.msra.mxu0 0.0
      %522 = vmatprep.subr.mxu0 0.0
      %523 = vmatpush1.msra.mxu0 0.0
      %524 = vmatprep.subr.mxu0 0.0
      %525 = vmatpush1.msra.mxu0 0.0
      %526 = vmatprep.mubr.f32.mxu0 0.0
      %527 = vmatmul.mubr.f32.gmra.mrb[0].mxu0 %v420
      %v528 = vpop.f32.mrb[0].mxu0
      %v529 = vadd.f32 %v356, %v528
      %v530 = vpop.f32.mrb[0].mxu0
      %531 = vmatprep.mubr.f32.mxu0 0.0
      %532 = vmatmul.mubr.f32.gmra.mrb[0].mxu0 %v423
      %v533 = vpop.f32.mrb[0].mxu0
      %v534 = vadd.f32 %v361, %v533
      %v535 = vpop.f32.mrb[0].mxu0
      %536 = vmatprep.mubr.f32.mxu0 0.0
      %537 = vmatmul.mubr.f32.gmra.mrb[0].mxu0 %v426
      %v538 = vpop.f32.mrb[0].mxu0
      %v539 = vadd.f32 %v366, %v538
      %v540 = vpop.f32.mrb[0].mxu0
      %541 = vmatprep.mubr.f32.mxu0 0.0
      %542 = vmatmul.mubr.f32.gmra.mrb[0].mxu0 %v429
      %v543 = vpop.f32.mrb[0].mxu0
      %v544 = vadd.f32 %v371, %v543
      %v545 = vpop.f32.mrb[0].mxu0
      %546 = vmatprep.mubr.f32.mxu0 0.0
      %547 = vmatmul.mubr.f32.gmra.mrb[0].mxu0 %v432
      %v548 = vpop.f32.mrb[0].mxu0
      %v549 = vadd.f32 %v376, %v548
      %v550 = vpop.f32.mrb[0].mxu0
      %551 = vmatprep.mubr.f32.mxu0 0.0
      %552 = vmatmul.mubr.f32.gmra.mrb[0].mxu0 %v435
      %v553 = vpop.f32.mrb[0].mxu0
      %v554 = vadd.f32 %v381, %v553
      %v555 = vpop.f32.mrb[0].mxu0
      %556 = vmatprep.mubr.f32.mxu0 0.0
      %557 = vmatmul.mubr.f32.gmra.mrb[0].mxu0 %v438
      %v558 = vpop.f32.mrb[0].mxu0
      %v559 = vadd.f32 %v386, %v558
      %v560 = vpop.f32.mrb[0].mxu0
      %561 = vmatprep.mubr.f32.mxu0 0.0
      %562 = vmatmul.mubr.f32.gmra.mrb[0].mxu0 %v441
      %v563 = vpop.f32.mrb[0].mxu0
      %v564 = vadd.f32 %v391, %v563
      %v565 = vpop.f32.mrb[0].mxu0
      %566 = vmatprep.mubr.f32.mxu0 0.0
      %567 = vmatmul.mubr.f32.gmra.mrb[0].mxu0 %v444
      %v568 = vpop.f32.mrb[0].mxu0
      %v569 = vadd.f32 %v396, %v568
      %v570 = vpop.f32.mrb[0].mxu0
      %571 = vmatprep.mubr.f32.mxu0 0.0
      %572 = vmatmul.mubr.f32.gmra.mrb[0].mxu0 %v447
      %v573 = vpop.f32.mrb[0].mxu0
      %v574 = vadd.f32 %v401, %v573
      %v575 = vpop.f32.mrb[0].mxu0
      %576 = vmatprep.mubr.f32.mxu0 0.0
      %577 = vmatmul.mubr.f32.gmra.mrb[0].mxu0 %v450
      %v578 = vpop.f32.mrb[0].mxu0
      %v579 = vadd.f32 %v406, %v578
      %v580 = vpop.f32.mrb[0].mxu0
      %581 = vmatprep.mubr.f32.mxu0 0.0
      %582 = vmatmul.mubr.f32.gmra.mrb[0].mxu0 %v453
      %v583 = vpop.f32.mrb[0].mxu0
      %v584 = vadd.f32 %v411, %v583
      %v585 = vpop.f32.mrb[0].mxu0
      %586 = vmatprep.mubr.f32.mxu0 0.0
      %587 = vmatmul.mubr.f32.gmra.mrb[0].mxu0 %v456
      %v588 = vpop.f32.mrb[0].mxu0
      %v589 = vadd.f32 %v416, %v588
      %v590 = vpop.f32.mrb[0].mxu0
      %591 = vdwg.mxu0
      %v592 = vtanh.pop %v529
      %v593 = vtanh.pop %v534
      %v594 = vtanh.pop %v539
      %v595 = vtanh.pop %v544
      %v596 = vtanh.pop %v549
      %v597 = vtanh.pop %v554
      %v598 = vtanh.pop %v559
      %v599 = vtanh.pop %v564
      %v600 = vtanh.pop %v569
      %v601 = vtanh.pop %v574
      %v602 = vtanh.pop %v579
      %v603 = vtanh.pop %v584
      %v604 = vtanh.pop %v589
      %606 = vset.pattern.permute.xlu0 0
      %607 = vperm.xlu0 %606, %v341
      %v608 = vpop.permute.xlu0 %607
      %611 = vset.pattern.permute.xlu0 0
      %612 = vperm.xlu0 %611, %v342
      %v613 = vpop.permute.xlu0 %612
      %616 = vset.pattern.permute.xlu0 0
      %617 = vperm.xlu0 %616, %v343
      %v618 = vpop.permute.xlu0 %617
      %621 = vset.pattern.permute.xlu0 0
      %622 = vperm.xlu0 %621, %v344
      %v623 = vpop.permute.xlu0 %622
      %626 = vset.pattern.permute.xlu0 0
      %627 = vperm.xlu0 %626, %v345
      %v628 = vpop.permute.xlu0 %627
      %631 = vset.pattern.permute.xlu0 0
      %632 = vperm.xlu0 %631, %v346
      %v633 = vpop.permute.xlu0 %632
      %636 = vset.pattern.permute.xlu0 0
      %637 = vperm.xlu0 %636, %v347
      %v638 = vpop.permute.xlu0 %637
      %vm640 = vcmask 818176
      %v642 = vsel %vm640, %v334, 0
      %v645 = vsel %vm640, %v335, 0
      %v648 = vsel %vm640, %v336, 0
      %v651 = vsel %vm640, %v337, 0
      %v654 = vsel %vm640, %v338, 0
      %v657 = vsel %vm640, %v339, 0
      %v660 = vsel %vm640, %v340, 0
      %v663 = vsel %vm458, %v604, 0
      %665 = vmatprep.subr.mxu0 0.0
      %666 = vmatpush1.msra.mxu0 %v592
      %667 = vmatprep.subr.mxu0 0.0
      %668 = vmatpush1.msra.mxu0 %v593
      %669 = vmatprep.subr.mxu0 0.0
      %670 = vmatpush1.msra.mxu0 %v594
      %671 = vmatprep.subr.mxu0 0.0
      %672 = vmatpush1.msra.mxu0 %v595
      %673 = vmatprep.subr.mxu0 0.0
      %674 = vmatpush1.msra.mxu0 %v596
      %675 = vmatprep.subr.mxu0 0.0
      %676 = vmatpush1.msra.mxu0 %v597
      %677 = vmatprep.subr.mxu0 0.0
      %678 = vmatpush1.msra.mxu0 %v598
      %679 = vmatprep.subr.mxu0 0.0
      %680 = vmatpush1.msra.mxu0 %v599
      %681 = vmatprep.subr.mxu0 0.0
      %682 = vmatpush1.msra.mxu0 %v600
      %683 = vmatprep.subr.mxu0 0.0
      %684 = vmatpush1.msra.mxu0 %v601
      %685 = vmatprep.subr.mxu0 0.0
      %686 = vmatpush1.msra.mxu0 %v602
      %687 = vmatprep.subr.mxu0 0.0
      %688 = vmatpush1.msra.mxu0 %v603
      %689 = vmatprep.subr.mxu0 0.0
      %690 = vmatpush1.msra.mxu0 %v663
      %691 = vmatprep.subr.mxu0 0.0
      %692 = vmatpush1.msra.mxu0 0.0
      %693 = vmatprep.subr.mxu0 0.0
      %694 = vmatpush1.msra.mxu0 0.0
      %695 = vmatprep.subr.mxu0 0.0
      %696 = vmatpush1.msra.mxu0 0.0
      %697 = vmatprep.subr.mxu0 0.0
      %698 = vmatpush1.msra.mxu0 0.0
      %699 = vmatprep.subr.mxu0 0.0
      %700 = vmatpush1.msra.mxu0 0.0
      %701 = vmatprep.subr.mxu0 0.0
      %702 = vmatpush1.msra.mxu0 0.0
      %703 = vmatprep.subr.mxu0 0.0
      %704 = vmatpush1.msra.mxu0 0.0
      %705 = vmatprep.subr.mxu0 0.0
      %706 = vmatpush1.msra.mxu0 0.0
      %707 = vmatprep.subr.mxu0 0.0
      %708 = vmatpush1.msra.mxu0 0.0
      %709 = vmatprep.subr.mxu0 0.0
      %710 = vmatpush1.msra.mxu0 0.0
      %711 = vmatprep.subr.mxu0 0.0
      %712 = vmatpush1.msra.mxu0 0.0
      %713 = vmatprep.subr.mxu0 0.0
      %714 = vmatpush1.msra.mxu0 0.0
      %715 = vmatprep.subr.mxu0 0.0
      %716 = vmatpush1.msra.mxu0 0.0
      %717 = vmatprep.subr.mxu0 0.0
      %718 = vmatpush1.msra.mxu0 0.0
      %719 = vmatprep.subr.mxu0 0.0
      %720 = vmatpush1.msra.mxu0 0.0
      %721 = vmatprep.subr.mxu0 0.0
      %722 = vmatpush1.msra.mxu0 0.0
      %723 = vmatprep.subr.mxu0 0.0
      %724 = vmatpush1.msra.mxu0 0.0
      %725 = vmatprep.subr.mxu0 0.0
      %726 = vmatpush1.msra.mxu0 0.0
      %727 = vmatprep.subr.mxu0 0.0
      %728 = vmatpush1.msra.mxu0 0.0
      %729 = vmatprep.mubr.f32.mxu0 0.0
      %730 = vmatmul.mubr.f32.gmra.mrb[0].mxu0 %v642
      %v731 = vpop.f32.mrb[0].mxu0
      %v732 = vadd.f32 %v608, %v731
      %v733 = vpop.f32.mrb[0].mxu0
      %734 = vmatprep.mubr.f32.mxu0 0.0
      %735 = vmatmul.mubr.f32.gmra.mrb[0].mxu0 %v645
      %v736 = vpop.f32.mrb[0].mxu0
      %v737 = vadd.f32 %v613, %v736
      %v738 = vpop.f32.mrb[0].mxu0
      %739 = vmatprep.mubr.f32.mxu0 0.0
      %740 = vmatmul.mubr.f32.gmra.mrb[0].mxu0 %v648
      %v741 = vpop.f32.mrb[0].mxu0
      %v742 = vadd.f32 %v618, %v741
      %v743 = vpop.f32.mrb[0].mxu0
      %744 = vmatprep.mubr.f32.mxu0 0.0
      %745 = vmatmul.mubr.f32.gmra.mrb[0].mxu0 %v651
      %v746 = vpop.f32.mrb[0].mxu0
      %v747 = vadd.f32 %v623, %v746
      %v748 = vpop.f32.mrb[0].mxu0
      %749 = vmatprep.mubr.f32.mxu0 0.0
      %750 = vmatmul.mubr.f32.gmra.mrb[0].mxu0 %v654
      %v751 = vpop.f32.mrb[0].mxu0
      %v752 = vadd.f32 %v628, %v751
      %v753 = vpop.f32.mrb[0].mxu0
      %754 = vmatprep.mubr.f32.mxu0 0.0
      %755 = vmatmul.mubr.f32.gmra.mrb[0].mxu0 %v657
      %v756 = vpop.f32.mrb[0].mxu0
      %v757 = vadd.f32 %v633, %v756
      %v758 = vpop.f32.mrb[0].mxu0
      %759 = vmatprep.mubr.f32.mxu0 0.0
      %760 = vmatmul.mubr.f32.gmra.mrb[0].mxu0 %v660
      %v761 = vpop.f32.mrb[0].mxu0
      %v762 = vadd.f32 %v638, %v761
      %v763 = vpop.f32.mrb[0].mxu0
      %764 = vdwg.mxu0
      %v765 = vtanh.pop %v732
      %v766 = vtanh.pop %v737
      %v767 = vtanh.pop %v742
      %v768 = vtanh.pop %v747
      %v769 = vtanh.pop %v752
      %v770 = vtanh.pop %v757
      %v771 = vtanh.pop %v762
      %773 = vset.pattern.permute.xlu0 0
      %774 = vperm.xlu0 %773, %v349
      %v775 = vpop.permute.xlu0 %774
      %vm777 = vcmask 408576
      %v779 = vsel %vm777, %v348, 0
      %vm781 = vcmask 1041408
      %v783 = vsel %vm781, %v771, 0
      %785 = vmatprep.subr.mxu0 0.0
      %786 = vmatpush1.msra.mxu0 %v765
      %787 = vmatprep.subr.mxu0 0.0
      %788 = vmatpush1.msra.mxu0 %v766
      %789 = vmatprep.subr.mxu0 0.0
      %790 = vmatpush1.msra.mxu0 %v767
      %791 = vmatprep.subr.mxu0 0.0
      %792 = vmatpush1.msra.mxu0 %v768
      %793 = vmatprep.subr.mxu0 0.0
      %794 = vmatpush1.msra.mxu0 %v769
      %795 = vmatprep.subr.mxu0 0.0
      %796 = vmatpush1.msra.mxu0 %v770
      %797 = vmatprep.subr.mxu0 0.0
      %798 = vmatpush1.msra.mxu0 %v783
      %799 = vmatprep.subr.mxu0 0.0
      %800 = vmatpush1.msra.mxu0 0.0
      %801 = vmatprep.subr.mxu0 0.0
      %802 = vmatpush1.msra.mxu0 0.0
      %803 = vmatprep.subr.mxu0 0.0
      %804 = vmatpush1.msra.mxu0 0.0
      %805 = vmatprep.subr.mxu0 0.0
      %806 = vmatpush1.msra.mxu0 0.0
      %807 = vmatprep.subr.mxu0 0.0
      %808 = vmatpush1.msra.mxu0 0.0
      %809 = vmatprep.subr.mxu0 0.0
      %810 = vmatpush1.msra.mxu0 0.0
      %811 = vmatprep.subr.mxu0 0.0
      %812 = vmatpush1.msra.mxu0 0.0
      %813 = vmatprep.subr.mxu0 0.0
      %814 = vmatpush1.msra.mxu0 0.0
      %815 = vmatprep.subr.mxu0 0.0
      %816 = vmatpush1.msra.mxu0 0.0
      %817 = vmatprep.subr.mxu0 0.0
      %818 = vmatpush1.msra.mxu0 0.0
      %819 = vmatprep.subr.mxu0 0.0
      %820 = vmatpush1.msra.mxu0 0.0
      %821 = vmatprep.subr.mxu0 0.0
      %822 = vmatpush1.msra.mxu0 0.0
      %823 = vmatprep.subr.mxu0 0.0
      %824 = vmatpush1.msra.mxu0 0.0
      %825 = vmatprep.subr.mxu0 0.0
      %826 = vmatpush1.msra.mxu0 0.0
      %827 = vmatprep.subr.mxu0 0.0
      %828 = vmatpush1.msra.mxu0 0.0
      %829 = vmatprep.subr.mxu0 0.0
      %830 = vmatpush1.msra.mxu0 0.0
      %831 = vmatprep.subr.mxu0 0.0
      %832 = vmatpush1.msra.mxu0 0.0
      %833 = vmatprep.subr.mxu0 0.0
      %834 = vmatpush1.msra.mxu0 0.0
      %835 = vmatprep.subr.mxu0 0.0
      %836 = vmatpush1.msra.mxu0 0.0
      %837 = vmatprep.subr.mxu0 0.0
      %838 = vmatpush1.msra.mxu0 0.0
      %839 = vmatprep.subr.mxu0 0.0
      %840 = vmatpush1.msra.mxu0 0.0
      %841 = vmatprep.subr.mxu0 0.0
      %842 = vmatpush1.msra.mxu0 0.0
      %843 = vmatprep.subr.mxu0 0.0
      %844 = vmatpush1.msra.mxu0 0.0
      %845 = vmatprep.subr.mxu0 0.0
      %846 = vmatpush1.msra.mxu0 0.0
      %847 = vmatprep.subr.mxu0 0.0
      %848 = vmatpush1.msra.mxu0 0.0
      %849 = vmatprep.mubr.f32.mxu0 0.0
      %850 = vmatmul.mubr.f32.gmra.mrb[0].mxu0 %v779
      %v851 = vpop.f32.mrb[0].mxu0
      %v852 = vadd.f32 %v775, %v851
      %v853 = vpop.f32.mrb[0].mxu0
      %854 = vdwg.mxu0
      %855 = vst [vmem:[%s307] sm:$0x1f] %v852
      %p856 = scmp.lt.s32.totalorder %s22, 1
      %s857 = scalar_select %p856, %s22, 1
      %p858 = scmp.lt.s32.totalorder %s23, 0
      %s859 = scalar_select %p858, %s23, 0
      %s860 = sadd.s32 %s859, %s857
      %s861 = smul.addr %s860, 8
      %s862 = scalar_lea.vmem %s7, %s861
      // Predicated region
      $region49: #{network_model_forward.1} parent=47 // pred_check
        %p863 = pneg %p204
      $region50: #{network_model_forward.1} parent=47 // pred_check_branch
        %865 = sbr.rel (%p863) target = $region52
      $region51: #{network_model_forward.1} parent=47 // pred_region
        _
      $region52: #{network_model_forward.1} parent=47 // pred_fallthru
        _
    $region48: #{network_model_forward.1} parent=5 // pred_fallthru
      _
    %p866 = scmp.le.s32.totalorder 2, %s13
    // Predicated region
    $region53: #{network_model_forward.1} parent=5 // pred_check
      %p867 = pneg %p866
    $region54: #{network_model_forward.1} parent=5 // pred_check_branch
      %869 = sbr.rel (%p867) target = $region56
    $region55: #{network_model_forward.1} parent=5 // pred_region
      %s870 = ssub.s32 %s13, 2
      // Predicated region
      $region57: #{network_model_forward.1} parent=55 // pred_check
        %p871 = pneg %p210
      $region58: #{network_model_forward.1} parent=55 // pred_check_branch
        %873 = sbr.rel (%p871) target = $region60
      $region59: #{network_model_forward.1} parent=55 // pred_region
        %p874 = scmp.lt.s32.totalorder %s24, 1
        %s875 = scalar_select %p874, %s24, 1
        %p876 = scmp.lt.s32.totalorder %s25, 0
        %s877 = scalar_select %p876, %s25, 0
        %s878 = sadd.s32 %s877, %s875
        %s879 = smul.addr %s878, 8
        %s880 = scalar_lea.vmem %s7, %s879
      $region60: #{network_model_forward.1} parent=55 // pred_fallthru
        _
    $region56: #{network_model_forward.1} parent=5 // pred_fallthru
      _
  $region6: #{network_model_forward.1} parent=0 // loop_footer
    %s17 = sadd.s32 1, %s13
  $region7: #{network_model_forward.1} parent=0 // loop_footer_branch
    %12 = sbr.rel target = $region3
  $region8: #{network_model_forward.1} parent=0 // loop_exit
    _

</llo_original>
